<compile_context>
chip_gen: v6e
topology: v6e:2x2x1
jax: 0.10.0
libtpu: 0.0.40
codegen_flags: <defaults>
</compile_context>

<pallas_src>
import math
import jax
import jax.numpy as jnp
from jax.experimental import pallas as pl
from jax.experimental.pallas import tpu as pltpu


_SQRT_2_OVER_PI = 0.7978845608028654


def _gelu_tanh(h):
    # nn.GELU(approximate='tanh'): 0.5*x*(1 + tanh(sqrt(2/pi)*(x + 0.044715*x^3)))
    return 0.5 * h * (1.0 + jnp.tanh(_SQRT_2_OVER_PI * (h + 0.044715 * (h * h * h))))


def _make_mlp_kernel(gelu_dtype):
    def mlp_kernel(x_ref, wfc_ref, bfc_ref, wproj_ref, bproj_ref, o_ref, acc_ref):
        hk = pl.program_id(1)

        @pl.when(hk == 0)
        def _():
            acc_ref[...] = jnp.zeros_like(acc_ref)

        # Cast x per-tile (input may arrive f32) -> no wrapper-side cast pass.
        xt = x_ref[...].astype(wfc_ref.dtype)
        # c_fc chunk: (tm, C) @ (C, tH) -> f32 accum, + f32 bias chunk (1, tH).
        h = jnp.dot(xt, wfc_ref[...],
                    preferred_element_type=jnp.float32) + bfc_ref[...]
        # GELU in bf16 on v6e/v7x (bf16 VPU), f32 on v5e (no bf16 VPU/EUP).
        g = _gelu_tanh(h.astype(gelu_dtype))
        # c_proj chunk: (tm, tH) @ (tH, C), accumulated in f32.
        acc_ref[...] += jnp.dot(g.astype(wproj_ref.dtype), wproj_ref[...],
                                preferred_element_type=jnp.float32)

        @pl.when(hk == pl.num_programs(1) - 1)
        def _():
            o_ref[...] = (acc_ref[...] + bproj_ref[...]).astype(o_ref.dtype)

    return mlp_kernel


def _round_up(x, m):
    return ((x + m - 1) // m) * m


def _tpu_generation():
    try:
        kind = jax.devices()[0].device_kind.lower()
    except Exception:
        return 6
    for g in (7, 6, 5, 4):
        if f"v{g}" in kind:
            return g
    return 6


def _vmem_capacity_bytes(gen):
    try:
        cap = getattr(pltpu.get_tpu_info(), "vmem_capacity_bytes", None)
        if cap:
            return int(cap)
    except Exception:
        pass
    return (64 << 20) if gen >= 7 else (128 << 20)


def prepare_mlp_params(w_fc, b_fc, w_proj, b_proj, compute_dtype=jnp.bfloat16):
    """One-time conversion of nn.Linear params (weight layout (out, in)) to the
    kernel layout/dtype. Call once and reuse across forwards so the weight cast
    is not an un-hidden per-call XLA pass."""
    return dict(
        w_fc_t=jnp.asarray(w_fc).T.astype(compute_dtype),          # (C, H)
        b_fc=jnp.asarray(b_fc).reshape(1, -1).astype(jnp.float32),  # (1, H)
        w_proj_t=jnp.asarray(w_proj).T.astype(compute_dtype),      # (H, C)
        b_proj=jnp.asarray(b_proj).reshape(1, -1).astype(jnp.float32),  # (1, C)
    )


def mlp_pallas(x, params, *, tm=None, th="auto"):
    """x: (B, T, C). params: output of prepare_mlp_params.
    th: "auto" (prefer resident weights), None (force resident), or int tile."""
    B, T, C = x.shape
    wfc, bfc = params["w_fc_t"], params["b_fc"]
    wproj, bproj = params["w_proj_t"], params["b_proj"]
    Cin, H = wfc.shape
    assert Cin == C and wproj.shape == (H, C)
    assert bfc.shape == (1, H) and bproj.shape == (1, C)
    M = B * T

    compute_dtype = wfc.dtype
    out_dtype = x.dtype
    xsz = jnp.dtype(x.dtype).itemsize
    osz = jnp.dtype(out_dtype).itemsize
    wsz = jnp.dtype(compute_dtype).itemsize

    gen = _tpu_generation()
    gelu_dtype = (compute_dtype
                  if (gen >= 6 and jnp.dtype(compute_dtype) == jnp.bfloat16)
                  else jnp.float32)
    gsz = jnp.dtype(gelu_dtype).itemsize

    # Scoped-VMEM budget: ~80% of physical (≈102 MiB v5e/v6e, ≈51 MiB v7x),
    # leaving headroom for Mosaic internal scratch.
    vmem_budget = int(0.80 * _vmem_capacity_bytes(gen))

    # bf16 packs 16 rows per vreg sublane group; align row tiles to that.
    sub = 16 if wsz == 2 else 8

    def clamp_tm(t):
        return max(sub, min(_round_up(t, sub), _round_up(M, sub)))

    def footprint(tm_, th_, wbuf):
        return (2 * tm_ * C * xsz                    # x tiles (double-buffered)
                + 2 * tm_ * C * osz                  # out tiles (double-buffered)
                + wbuf * 2 * C * th_ * wsz           # W_fc / W_proj chunks
                + wbuf * (th_ + C) * 4               # bias chunks (f32)
                + tm_ * C * 4                        # f32 accumulator scratch
                + tm_ * th_ * (4 + 2 * gsz + wsz))   # h / gelu temporaries

    tm_stream_default = {5: 512, 6: 768, 7: 512}.get(gen, 512)

    if th in (None, "auto"):
        # Preferred: fully resident, single-buffered weights.
        tm_eff = clamp_tm(tm if tm is not None else 512)
        while tm_eff > sub and footprint(tm_eff, H, wbuf=1) > vmem_budget:
            tm_eff = clamp_tm(tm_eff // 2)
        if th is None or footprint(tm_eff, H, wbuf=1) <= vmem_budget:
            th_eff = H
        else:
            # Stream the hidden dim with a generation-tuned row tile so the
            # streamed-weight path stays above the HBM roofline (AI ~ tm).
            tm_eff = clamp_tm(tm if tm is not None else tm_stream_default)
            cands = [c for c in (2048, 1024, 512, 256, 128)
                     if c <= H and H % c == 0]
            th_eff = cands[-1] if cands else H
            for c in cands:
                if footprint(tm_eff, c, wbuf=2) <= vmem_budget:
                    th_eff = c
                    break
    else:
        th_eff = min(int(th), H)
        assert th_eff == H or (H % th_eff == 0 and th_eff % 128 == 0), \
            "th must divide H and be a multiple of 128 (256/512 preferred)"
        tm_eff = clamp_tm(tm if tm is not None else
                          (512 if th_eff == H else tm_stream_default))

    # v7x megacore: give the "parallel" row axis >= 2 tiles so both TCs work.
    if tm is None and gen >= 7 and M > 2 * sub:
        while pl.cdiv(M, tm_eff) < 2 and tm_eff > sub:
            tm_eff = clamp_tm(tm_eff // 2)

    resident = (th_eff == H)
    grid = (pl.cdiv(M, tm_eff), pl.cdiv(H, th_eff))

    needed = footprint(tm_eff, th_eff, wbuf=(1 if resident else 2))
    vmem_limit = int(min(max(needed + (8 << 20), 32 << 20), vmem_budget))

    # Streamed weights are re-fetched once per row tile.
    weight_passes = grid[0] if grid[1] > 1 else 1
    cost = pl.CostEstimate(
        flops=int(4 * M * C * H),
        transcendentals=int(M * H),
        bytes_accessed=int(M * C * xsz + M * C * osz
                           + weight_passes * 2 * C * H * wsz + (H + C) * 4),
    )

    x2 = x.reshape(M, C)
    kernel = _make_mlp_kernel(gelu_dtype)

    def call(weight_pipe):
        in_specs = [
            pl.BlockSpec((tm_eff, C), lambda i, hk: (i, 0)),      # x rows
            pl.BlockSpec((C, th_eff), lambda i, hk: (0, hk),
                         pipeline_mode=weight_pipe),              # W_fc^T chunk
            pl.BlockSpec((1, th_eff), lambda i, hk: (0, hk),
                         pipeline_mode=weight_pipe),              # b_fc chunk
            pl.BlockSpec((th_eff, C), lambda i, hk: (hk, 0),
                         pipeline_mode=weight_pipe),              # W_proj^T chunk
            pl.BlockSpec((1, C), lambda i, hk: (0, 0),
                         pipeline_mode=weight_pipe),              # b_proj
        ]
        return pl.pallas_call(
            kernel,
            out_shape=jax.ShapeDtypeStruct((M, C), out_dtype),
            grid_spec=pltpu.PrefetchScalarGridSpec(
                num_scalar_prefetch=0,
                grid=grid,
                in_specs=in_specs,
                out_specs=pl.BlockSpec((tm_eff, C), lambda i, hk: (i, 0)),
                scratch_shapes=[pltpu.VMEM((tm_eff, C), jnp.float32)],
            ),
            compiler_params=pltpu.CompilerParams(
                dimension_semantics=("parallel", "arbitrary"),
                vmem_limit_bytes=vmem_limit),
            cost_estimate=cost,
        )(x2, wfc, bfc, wproj, bproj)

    if resident:
        # Constant index_maps -> single buffer suffices; default double
        # buffering of resident weights is pure VMEM waste.
        try:
            out = call(pl.Buffered(1))
        except Exception:
            out = call(None)   # fall back if single-buffering is rejected
    else:
        out = call(None)
    return out.reshape(B, T, C)


def gelu_tanh_ref(x):
    return 0.5 * x * (1.0 + jnp.tanh(_SQRT_2_OVER_PI * (x + 0.044715 * x ** 3)))


if __name__ == "__main__":
    # Small GPT-style config: n_embd=64 -> hidden=256 (exercises the H-tiled
    # path with th=128 as well as the resident-weight path).
    B, T, C = 2, 8, 64
    H = 4 * C

    key = jax.random.PRNGKey(0)
    kx, k1, k2, k3, k4 = jax.random.split(key, 5)

    x = jax.random.normal(kx, (B, T, C), dtype=jnp.float32)

    # PyTorch nn.Linear-style init: U(-1/sqrt(fan_in), 1/sqrt(fan_in)); weight (out, in).
    bound_fc = 1.0 / math.sqrt(C)
    w_fc = jax.random.uniform(k1, (H, C), minval=-bound_fc, maxval=bound_fc,
                              dtype=jnp.float32)
    b_fc = jax.random.uniform(k2, (H,), minval=-bound_fc, maxval=bound_fc,
                              dtype=jnp.float32)
    bound_pr = 1.0 / math.sqrt(H)
    w_proj = jax.random.uniform(k3, (C, H), minval=-bound_pr, maxval=bound_pr,
                                dtype=jnp.float32)
    b_proj = jax.random.uniform(k4, (C,), minval=-bound_pr, maxval=bound_pr,
                                dtype=jnp.float32)

    # Pure-JAX reference: y = gelu_tanh(x @ Wfc^T + bfc) @ Wproj^T + bproj
    ref = gelu_tanh_ref(x @ w_fc.T + b_fc) @ w_proj.T + b_proj

    # 1) f32 compute, resident single-buffered weights (tight check).
    params_f32 = prepare_mlp_params(w_fc, b_fc, w_proj, b_proj,
                                    compute_dtype=jnp.float32)
    out_f32 = jax.block_until_ready(mlp_pallas(x, params_f32))
    assert out_f32.shape == (B, T, C)
    assert jnp.allclose(out_f32, ref, atol=1e-3, rtol=1e-3), "f32 path mismatch"

    # 2) bf16 compute, explicitly H-tiled (streamed-weight) path (loose check).
    params_bf16 = prepare_mlp_params(w_fc, b_fc, w_proj, b_proj,
                                     compute_dtype=jnp.bfloat16)
    out_bf16 = jax.block_until_ready(mlp_pallas(x, params_bf16, th=128))
    assert out_bf16.shape == (B, T, C)
    assert jnp.allclose(out_bf16, ref, atol=5e-2, rtol=5e-2), "bf16 path mismatch"

    # 3) bf16 compute, auto policy (resident weights on this tiny config).
    out_auto = jax.block_until_ready(mlp_pallas(x, params_bf16))
    assert jnp.allclose(out_auto, ref, atol=5e-2, rtol=5e-2), "auto path mismatch"

    print("KERNEL_OK")
</pallas_src>

<mosaic_0001>
module attributes {stable_mosaic.version = 11 : i64} {
  func.func @mlp_kernel(%arg0: i32, %arg1: i32, %arg2: memref<16x64xf32, #tpu.memory_space<vmem>>, %arg3: memref<64x256xf32, #tpu.memory_space<vmem>>, %arg4: memref<1x256xf32, #tpu.memory_space<vmem>>, %arg5: memref<256x64xf32, #tpu.memory_space<vmem>>, %arg6: memref<1x64xf32, #tpu.memory_space<vmem>>, %arg7: memref<16x64xf32, #tpu.memory_space<vmem>>, %arg8: memref<16x64xf32, #tpu.memory_space<vmem>>) attributes {dimension_semantics = [#tpu.dimension_semantics<parallel>, #tpu.dimension_semantics<arbitrary>], iteration_bounds = array<i64: 1, 1>, scalar_prefetch = 0 : i64, scratch_operands = 1 : i64, tpu.core_type = #tpu.core_type<tc>, window_params = [{transform_indices = @transform_0, window_bounds = array<i64: 16, 64>}, {pipeline_mode = #tpu.pipeline_mode<synchronous>, transform_indices = @transform_1, window_bounds = array<i64: 64, 256>}, {pipeline_mode = #tpu.pipeline_mode<synchronous>, transform_indices = @transform_2, window_bounds = array<i64: 1, 256>}, {pipeline_mode = #tpu.pipeline_mode<synchronous>, transform_indices = @transform_3, window_bounds = array<i64: 256, 64>}, {pipeline_mode = #tpu.pipeline_mode<synchronous>, transform_indices = @transform_4, window_bounds = array<i64: 1, 64>}, {transform_indices = @transform_5, window_bounds = array<i64: 16, 64>}]} {
    %c0_i32 = arith.constant 0 : i32
    %0 = arith.cmpi eq, %arg1, %c0_i32 : i32
    %1 = arith.extui %0 : i1 to i32
    %c0_i32_0 = arith.constant 0 : i32
    %2 = arith.cmpi ne, %1, %c0_i32_0 : i32
    scf.if %2 {
      %cst_19 = arith.constant 0.000000e+00 : f32
      %30 = vector.broadcast %cst_19 : f32 to vector<16x64xf32>
      %c0_20 = arith.constant 0 : index
      %c0_21 = arith.constant 0 : index
      %31 = vector.load %arg8[%c0_20, %c0_21] : memref<16x64xf32, #tpu.memory_space<vmem>>, vector<16x64xf32>
      tpu.vector_store %arg8[%c0_20, %c0_21], %30 {strides = array<i32>} : memref<16x64xf32, #tpu.memory_space<vmem>>, vector<16x64xf32>,
    } else {
    }
    %c0 = arith.constant 0 : index
    %c0_1 = arith.constant 0 : index
    %3 = vector.load %arg2[%c0, %c0_1] : memref<16x64xf32, #tpu.memory_space<vmem>>, vector<16x64xf32>
    %c0_2 = arith.constant 0 : index
    %c0_3 = arith.constant 0 : index
    %4 = vector.load %arg3[%c0_2, %c0_3] : memref<64x256xf32, #tpu.memory_space<vmem>>, vector<64x256xf32>
    %cst = arith.constant dense<0.000000e+00> : vector<16x256xf32>
    %5 = tpu.matmul %3, %4, %cst {dimension_numbers = #tpu.dot_dimension_numbers<[1], [0], [0], [1], [0, 0, 1, 1], [], []>} : vector<16x64xf32>, vector<64x256xf32>, vector<16x256xf32> -> vector<16x256xf32>
    %c0_4 = arith.constant 0 : index
    %c0_5 = arith.constant 0 : index
    %6 = vector.load %arg4[%c0_4, %c0_5] : memref<1x256xf32, #tpu.memory_space<vmem>>, vector<1x256xf32>
    %7 = vector.broadcast %6 : vector<1x256xf32> to vector<16x256xf32>
    %8 = arith.addf %5, %7 : vector<16x256xf32>
    %cst_6 = arith.constant 5.000000e-01 : f32
    %9 = vector.broadcast %cst_6 : f32 to vector<16x256xf32>
    %10 = arith.mulf %9, %8 : vector<16x256xf32>
    %11 = arith.mulf %8, %8 : vector<16x256xf32>
    %12 = arith.mulf %11, %8 : vector<16x256xf32>
    %cst_7 = arith.constant 4.471500e-02 : f32
    %13 = vector.broadcast %cst_7 : f32 to vector<16x256xf32>
    %14 = arith.mulf %13, %12 : vector<16x256xf32>
    %15 = arith.addf %8, %14 : vector<16x256xf32>
    %cst_8 = arith.constant 0.797884583 : f32
    %16 = vector.broadcast %cst_8 : f32 to vector<16x256xf32>
    %17 = arith.mulf %16, %15 : vector<16x256xf32>
    %18 = math.tanh %17 : vector<16x256xf32>
    %cst_9 = arith.constant 1.000000e+00 : f32
    %19 = vector.broadcast %cst_9 : f32 to vector<16x256xf32>
    %20 = arith.addf %19, %18 : vector<16x256xf32>
    %21 = arith.mulf %10, %20 : vector<16x256xf32>
    %c0_10 = arith.constant 0 : index
    %c0_11 = arith.constant 0 : index
    %22 = vector.load %arg8[%c0_10, %c0_11] : memref<16x64xf32, #tpu.memory_space<vmem>>, vector<16x64xf32>
    %c0_12 = arith.constant 0 : index
    %c0_13 = arith.constant 0 : index
    %23 = vector.load %arg5[%c0_12, %c0_13] : memref<256x64xf32, #tpu.memory_space<vmem>>, vector<256x64xf32>
    %cst_14 = arith.constant dense<0.000000e+00> : vector<16x64xf32>
    %24 = tpu.matmul %21, %23, %cst_14 {dimension_numbers = #tpu.dot_dimension_numbers<[1], [0], [0], [1], [0, 0, 1, 1], [], []>} : vector<16x256xf32>, vector<256x64xf32>, vector<16x64xf32> -> vector<16x64xf32>
    %25 = arith.addf %22, %24 : vector<16x64xf32>
    %c0_15 = arith.constant 0 : index
    %c0_16 = arith.constant 0 : index
    %26 = vector.load %arg8[%c0_15, %c0_16] : memref<16x64xf32, #tpu.memory_space<vmem>>, vector<16x64xf32>
    tpu.vector_store %arg8[%c0_15, %c0_16], %25 {strides = array<i32>} : memref<16x64xf32, #tpu.memory_space<vmem>>, vector<16x64xf32>,
    %c0_i32_17 = arith.constant 0 : i32
    %27 = arith.cmpi eq, %arg1, %c0_i32_17 : i32
    %28 = arith.extui %27 : i1 to i32
    %c0_i32_18 = arith.constant 0 : i32
    %29 = arith.cmpi ne, %28, %c0_i32_18 : i32
    scf.if %29 {
      %c0_19 = arith.constant 0 : index
      %c0_20 = arith.constant 0 : index
      %30 = vector.load %arg8[%c0_19, %c0_20] : memref<16x64xf32, #tpu.memory_space<vmem>>, vector<16x64xf32>
      %c0_21 = arith.constant 0 : index
      %c0_22 = arith.constant 0 : index
      %31 = vector.load %arg6[%c0_21, %c0_22] : memref<1x64xf32, #tpu.memory_space<vmem>>, vector<1x64xf32>
      %32 = vector.broadcast %31 : vector<1x64xf32> to vector<16x64xf32>
      %33 = arith.addf %30, %32 : vector<16x64xf32>
      %c0_23 = arith.constant 0 : index
      %c0_24 = arith.constant 0 : index
      %34 = vector.load %arg7[%c0_23, %c0_24] : memref<16x64xf32, #tpu.memory_space<vmem>>, vector<16x64xf32>
      tpu.vector_store %arg7[%c0_23, %c0_24], %33 {strides = array<i32>} : memref<16x64xf32, #tpu.memory_space<vmem>>, vector<16x64xf32>,
    } else {
    }
    return
  }
  func.func @transform_0(%arg0: i32, %arg1: i32) -> (i32, i32) {
    %c0_i32 = arith.constant 0 : i32
    %c0_i32_0 = arith.constant 0 : i32
    return %arg0, %c0_i32 : i32, i32
  }
  func.func @transform_1(%arg0: i32, %arg1: i32) -> (i32, i32) {
    %c0_i32 = arith.constant 0 : i32
    %c0_i32_0 = arith.constant 0 : i32
    return %c0_i32, %arg1 : i32, i32
  }
  func.func @transform_2(%arg0: i32, %arg1: i32) -> (i32, i32) {
    %c0_i32 = arith.constant 0 : i32
    %c0_i32_0 = arith.constant 0 : i32
    return %c0_i32, %arg1 : i32, i32
  }
  func.func @transform_3(%arg0: i32, %arg1: i32) -> (i32, i32) {
    %c0_i32 = arith.constant 0 : i32
    %c0_i32_0 = arith.constant 0 : i32
    return %arg1, %c0_i32 : i32, i32
  }
  func.func @transform_4(%arg0: i32, %arg1: i32) -> (i32, i32) {
    %c0_i32 = arith.constant 0 : i32
    %c0_i32_0 = arith.constant 0 : i32
    %c0_i32_1 = arith.constant 0 : i32
    return %c0_i32, %c0_i32_0 : i32, i32
  }
  func.func @transform_5(%arg0: i32, %arg1: i32) -> (i32, i32) {
    %c0_i32 = arith.constant 0 : i32
    %c0_i32_0 = arith.constant 0 : i32
    return %arg0, %c0_i32 : i32, i32
  }
}

module attributes {stable_mosaic.version = 11 : i64} {
  func.func @mlp_kernel(%arg0: i32, %arg1: i32, %arg2: memref<16x64xf32, #tpu.memory_space<vmem>>, %arg3: memref<64x256xf32, #tpu.memory_space<vmem>>, %arg4: memref<1x256xf32, #tpu.memory_space<vmem>>, %arg5: memref<256x64xf32, #tpu.memory_space<vmem>>, %arg6: memref<1x64xf32, #tpu.memory_space<vmem>>, %arg7: memref<16x64xf32, #tpu.memory_space<vmem>>, %arg8: memref<16x64xf32, #tpu.memory_space<vmem>>) attributes {dimension_semantics = [#tpu.dimension_semantics<parallel>, #tpu.dimension_semantics<arbitrary>], iteration_bounds = array<i64: 1, 1>, scalar_prefetch = 0 : i64, scratch_operands = 1 : i64, tpu.core_type = #tpu.core_type<tc>, window_params = [{transform_indices = @transform_0, window_bounds = array<i64: 16, 64>}, {transform_indices = @transform_1, window_bounds = array<i64: 64, 256>}, {transform_indices = @transform_2, window_bounds = array<i64: 1, 256>}, {transform_indices = @transform_3, window_bounds = array<i64: 256, 64>}, {pipeline_mode = #tpu.pipeline_mode<synchronous>, transform_indices = @transform_4, window_bounds = array<i64: 1, 64>}, {transform_indices = @transform_5, window_bounds = array<i64: 16, 64>}]} {
    %c0_i32 = arith.constant 0 : i32
    %0 = arith.cmpi eq, %arg1, %c0_i32 : i32
    %1 = arith.extui %0 : i1 to i32
    %c0_i32_0 = arith.constant 0 : i32
    %2 = arith.cmpi ne, %1, %c0_i32_0 : i32
    scf.if %2 {
      %cst_19 = arith.constant 0.000000e+00 : f32
      %30 = vector.broadcast %cst_19 : f32 to vector<16x64xf32>
      %c0_20 = arith.constant 0 : index
      %c0_21 = arith.constant 0 : index
      %31 = vector.load %arg8[%c0_20, %c0_21] : memref<16x64xf32, #tpu.memory_space<vmem>>, vector<16x64xf32>
      tpu.vector_store %arg8[%c0_20, %c0_21], %30 {strides = array<i32>} : memref<16x64xf32, #tpu.memory_space<vmem>>, vector<16x64xf32>,
    } else {
    }
    %c0 = arith.constant 0 : index
    %c0_1 = arith.constant 0 : index
    %3 = vector.load %arg2[%c0, %c0_1] : memref<16x64xf32, #tpu.memory_space<vmem>>, vector<16x64xf32>
    %c0_2 = arith.constant 0 : index
    %c0_3 = arith.constant 0 : index
    %4 = vector.load %arg3[%c0_2, %c0_3] : memref<64x256xf32, #tpu.memory_space<vmem>>, vector<64x256xf32>
    %cst = arith.constant dense<0.000000e+00> : vector<16x256xf32>
    %5 = tpu.matmul %3, %4, %cst {dimension_numbers = #tpu.dot_dimension_numbers<[1], [0], [0], [1], [0, 0, 1, 1], [], []>} : vector<16x64xf32>, vector<64x256xf32>, vector<16x256xf32> -> vector<16x256xf32>
    %c0_4 = arith.constant 0 : index
    %c0_5 = arith.constant 0 : index
    %6 = vector.load %arg4[%c0_4, %c0_5] : memref<1x256xf32, #tpu.memory_space<vmem>>, vector<1x256xf32>
    %7 = vector.broadcast %6 : vector<1x256xf32> to vector<16x256xf32>
    %8 = arith.addf %5, %7 : vector<16x256xf32>
    %cst_6 = arith.constant 5.000000e-01 : f32
    %9 = vector.broadcast %cst_6 : f32 to vector<16x256xf32>
    %10 = arith.mulf %9, %8 : vector<16x256xf32>
    %11 = arith.mulf %8, %8 : vector<16x256xf32>
    %12 = arith.mulf %11, %8 : vector<16x256xf32>
    %cst_7 = arith.constant 4.471500e-02 : f32
    %13 = vector.broadcast %cst_7 : f32 to vector<16x256xf32>
    %14 = arith.mulf %13, %12 : vector<16x256xf32>
    %15 = arith.addf %8, %14 : vector<16x256xf32>
    %cst_8 = arith.constant 0.797884583 : f32
    %16 = vector.broadcast %cst_8 : f32 to vector<16x256xf32>
    %17 = arith.mulf %16, %15 : vector<16x256xf32>
    %18 = math.tanh %17 : vector<16x256xf32>
    %cst_9 = arith.constant 1.000000e+00 : f32
    %19 = vector.broadcast %cst_9 : f32 to vector<16x256xf32>
    %20 = arith.addf %19, %18 : vector<16x256xf32>
    %21 = arith.mulf %10, %20 : vector<16x256xf32>
    %c0_10 = arith.constant 0 : index
    %c0_11 = arith.constant 0 : index
    %22 = vector.load %arg8[%c0_10, %c0_11] : memref<16x64xf32, #tpu.memory_space<vmem>>, vector<16x64xf32>
    %c0_12 = arith.constant 0 : index
    %c0_13 = arith.constant 0 : index
    %23 = vector.load %arg5[%c0_12, %c0_13] : memref<256x64xf32, #tpu.memory_space<vmem>>, vector<256x64xf32>
    %cst_14 = arith.constant dense<0.000000e+00> : vector<16x64xf32>
    %24 = tpu.matmul %21, %23, %cst_14 {dimension_numbers = #tpu.dot_dimension_numbers<[1], [0], [0], [1], [0, 0, 1, 1], [], []>} : vector<16x256xf32>, vector<256x64xf32>, vector<16x64xf32> -> vector<16x64xf32>
    %25 = arith.addf %22, %24 : vector<16x64xf32>
    %c0_15 = arith.constant 0 : index
    %c0_16 = arith.constant 0 : index
    %26 = vector.load %arg8[%c0_15, %c0_16] : memref<16x64xf32, #tpu.memory_space<vmem>>, vector<16x64xf32>
    tpu.vector_store %arg8[%c0_15, %c0_16], %25 {strides = array<i32>} : memref<16x64xf32, #tpu.memory_space<vmem>>, vector<16x64xf32>,
    %c0_i32_17 = arith.constant 0 : i32
    %27 = arith.cmpi eq, %arg1, %c0_i32_17 : i32
    %28 = arith.extui %27 : i1 to i32
    %c0_i32_18 = arith.constant 0 : i32
    %29 = arith.cmpi ne, %28, %c0_i32_18 : i32
    scf.if %29 {
      %c0_19 = arith.constant 0 : index
      %c0_20 = arith.constant 0 : index
      %30 = vector.load %arg8[%c0_19, %c0_20] : memref<16x64xf32, #tpu.memory_space<vmem>>, vector<16x64xf32>
      %c0_21 = arith.constant 0 : index
      %c0_22 = arith.constant 0 : index
      %31 = vector.load %arg6[%c0_21, %c0_22] : memref<1x64xf32, #tpu.memory_space<vmem>>, vector<1x64xf32>
      %32 = vector.broadcast %31 : vector<1x64xf32> to vector<16x64xf32>
      %33 = arith.addf %30, %32 : vector<16x64xf32>
      %c0_23 = arith.constant 0 : index
      %c0_24 = arith.constant 0 : index
      %34 = vector.load %arg7[%c0_23, %c0_24] : memref<16x64xf32, #tpu.memory_space<vmem>>, vector<16x64xf32>
      tpu.vector_store %arg7[%c0_23, %c0_24], %33 {strides = array<i32>} : memref<16x64xf32, #tpu.memory_space<vmem>>, vector<16x64xf32>,
    } else {
    }
    return
  }
  func.func @transform_0(%arg0: i32, %arg1: i32) -> (i32, i32) {
    %c0_i32 = arith.constant 0 : i32
    %c0_i32_0 = arith.constant 0 : i32
    return %arg0, %c0_i32 : i32, i32
  }
  func.func @transform_1(%arg0: i32, %arg1: i32) -> (i32, i32) {
    %c0_i32 = arith.constant 0 : i32
    %c0_i32_0 = arith.constant 0 : i32
    return %c0_i32, %arg1 : i32, i32
  }
  func.func @transform_2(%arg0: i32, %arg1: i32) -> (i32, i32) {
    %c0_i32 = arith.constant 0 : i32
    %c0_i32_0 = arith.constant 0 : i32
    return %c0_i32, %arg1 : i32, i32
  }
  func.func @transform_3(%arg0: i32, %arg1: i32) -> (i32, i32) {
    %c0_i32 = arith.constant 0 : i32
    %c0_i32_0 = arith.constant 0 : i32
    return %arg1, %c0_i32 : i32, i32
  }
  func.func @transform_4(%arg0: i32, %arg1: i32) -> (i32, i32) {
    %c0_i32 = arith.constant 0 : i32
    %c0_i32_0 = arith.constant 0 : i32
    %c0_i32_1 = arith.constant 0 : i32
    return %c0_i32, %c0_i32_0 : i32, i32
  }
  func.func @transform_5(%arg0: i32, %arg1: i32) -> (i32, i32) {
    %c0_i32 = arith.constant 0 : i32
    %c0_i32_0 = arith.constant 0 : i32
    return %arg0, %c0_i32 : i32, i32
  }
}

</mosaic_0001>

<llo_original>
// kernel: tpu_custom_call.1
$region0: #{tpu_custom_call.1}
  #allocation0 [shape = 'u32[]', space=smem, size = 0x4, offset = 0x4, fixed_abs, tag = 'smem constant byte address 0x4 - core index']
  #allocation1 [shape = 'u32[144,128]{1,0:T(1,128)}', space=vmem, size = 0x12000, scoped, tag = 'internal scratch']
  #allocation2 [shape = 'f32[16,64]{1,0:T(8,128)}', space=vmem, size = 0x2000, scoped, tag = 'scratch operand']
  %s0 = inlined_call_operand.vmem [shape: f32[16,64], index: 0, kind: input, shape index: {}]
  %s1 = inlined_call_operand.vmem [shape: f32[64,256], index: 1, kind: input, shape index: {}]
  %s2 = inlined_call_operand.vmem [shape: f32[1,256], index: 2, kind: input, shape index: {}]
  %s3 = inlined_call_operand.vmem [shape: f32[256,64], index: 3, kind: input, shape index: {}]
  %s4 = inlined_call_operand.vmem [shape: f32[1,64], index: 4, kind: input, shape index: {}]
  %s5 = inlined_call_operand.hbm [shape: f32[16,64], index: 5, kind: output, shape index: {}]
  %s6 = sld [smem:[#allocation0]]
  $region38: #{tpu_custom_call.1} parent=0
    _
  %s8 = ssub.s32 1, %s6
  %s9 = scalar_select 0, %s8, %s6
  $region1: #{tpu_custom_call.1} parent=0
    #allocation3 [shape = 'u8[8192]{0}', space=vmem, size = 0x2000, scoped, tag = 'output window, operand 0, single buffered']
    #allocation4 [shape = 's32[1]{0}', space=sflag, size = 0x4, scoped, tag = 'scoped memory for tpu_custom_call.1']
    %10 = vsyncpa [#allocation4], 0
    // Predicated region
    $region2: #{tpu_custom_call.1} parent=1 // pred_check
      _
    $region3: #{tpu_custom_call.1} parent=1 // pred_check_branch
      %12 = sbr.rel (0) target = $region5
    $region4: #{tpu_custom_call.1} parent=1 // pred_region
      _
    $region5: #{tpu_custom_call.1} parent=1 // pred_fallthru
      _
    // Predicated region
    $region6: #{tpu_custom_call.1} parent=1 // pred_check
      _
    $region7: #{tpu_custom_call.1} parent=1 // pred_check_branch
      %14 = sbr.rel (0) target = $region9
    $region8: #{tpu_custom_call.1} parent=1 // pred_region
      _
    $region9: #{tpu_custom_call.1} parent=1 // pred_fallthru
      _
    // Predicated region
    $region10: #{tpu_custom_call.1} parent=1 // pred_check
      _
    $region11: #{tpu_custom_call.1} parent=1 // pred_check_branch
      %16 = sbr.rel (0) target = $region13
    $region12: #{tpu_custom_call.1} parent=1 // pred_region
      _
    $region13: #{tpu_custom_call.1} parent=1 // pred_fallthru
      _
    // Predicated region
    $region14: #{tpu_custom_call.1} parent=1 // pred_check
      _
    $region15: #{tpu_custom_call.1} parent=1 // pred_check_branch
      %18 = sbr.rel (0) target = $region17
    $region16: #{tpu_custom_call.1} parent=1 // pred_region
      _
    $region17: #{tpu_custom_call.1} parent=1 // pred_fallthru
      _
    // Predicated region
    $region18: #{tpu_custom_call.1} parent=1 // pred_check
      _
    $region19: #{tpu_custom_call.1} parent=1 // pred_check_branch
      %20 = sbr.rel (0) target = $region21
    $region20: #{tpu_custom_call.1} parent=1 // pred_region
      _
    $region21: #{tpu_custom_call.1} parent=1 // pred_fallthru
      _
    %p21 = scmp.eq.s32.totalorder 0, 0
    // Predicated region
    $region22: #{tpu_custom_call.1} parent=1 // pred_check
      %p22 = pneg %p21
    $region23: #{tpu_custom_call.1} parent=1 // pred_check_branch
      %24 = sbr.rel (%p22) target = $region25
    $region24: #{tpu_custom_call.1} parent=1 // pred_region
      %vm25 = vcmask 523264
      %26 = vst.msk [vmem:[#allocation2] sm:$0xff] %vm25, 0.0
      %27 = vst.msk [vmem:[#allocation2 + $0x8] sm:$0xff] %vm25, 0.0
    $region25: #{tpu_custom_call.1} parent=1 // pred_fallthru
      _
    %v28 = vld [vmem:[%s0] sm:$0xff]
    %v29 = vld [vmem:[%s0 + $0x8] sm:$0xff]
    %v30 = vld [vmem:[%s1] sm:$0xff]
    %v31 = vld [vmem:[%s1 + $0x8] sm:$0xff]
    %v32 = vld [vmem:[%s1 + $0x10] sm:$0xff]
    %v33 = vld [vmem:[%s1 + $0x18] sm:$0xff]
    %v34 = vld [vmem:[%s1 + $0x20] sm:$0xff]
    %v35 = vld [vmem:[%s1 + $0x28] sm:$0xff]
    %v36 = vld [vmem:[%s1 + $0x30] sm:$0xff]
    %v37 = vld [vmem:[%s1 + $0x38] sm:$0xff]
    %v38 = vld [vmem:[%s1 + $0x40] sm:$0xff]
    %v39 = vld [vmem:[%s1 + $0x48] sm:$0xff]
    %v40 = vld [vmem:[%s1 + $0x50] sm:$0xff]
    %v41 = vld [vmem:[%s1 + $0x58] sm:$0xff]
    %v42 = vld [vmem:[%s1 + $0x60] sm:$0xff]
    %v43 = vld [vmem:[%s1 + $0x68] sm:$0xff]
    %v44 = vld [vmem:[%s1 + $0x70] sm:$0xff]
    %v45 = vld [vmem:[%s1 + $0x78] sm:$0xff]
    %v46 = vld [vmem:[%s2] sm:$0x3]
    %v48 = vlaneseq
    %v49 = vshrl.u32 %v48, 7
    %v50 = vsub.s32 0, %v49
    %v51 = vrot.slane %v46, %v50
    %v52 = vlaneseq
    %v53 = vshrl.u32 %v52, 7
    %v54 = vsub.s32 1, %v53
    %v55 = vrot.slane %v46, %v54
    %vm58 = vcmask 523264
    %v60 = vsel %vm58, %v28, 0
    %v63 = vsel %vm58, %v29, 0
    %65 = vmatprep.subr.mxu0 0.0
    %66 = vmatpush1.msra.mxu0 0.0
    %67 = vmatprep.subr.mxu0 0.0
    %68 = vmatpush1.msra.mxu0 0.0
    %69 = vmatprep.subr.mxu0 0.0
    %70 = vmatpush1.msra.mxu0 0.0
    %71 = vmatprep.subr.mxu0 0.0
    %72 = vmatpush1.msra.mxu0 0.0
    %73 = vmatprep.subr.mxu0 0.0
    %74 = vmatpush1.msra.mxu0 0.0
    %75 = vmatprep.subr.mxu0 0.0
    %76 = vmatpush1.msra.mxu0 0.0
    %77 = vmatprep.subr.mxu0 0.0
    %78 = vmatpush1.msra.mxu0 0.0
    %79 = vmatprep.subr.mxu0 0.0
    %80 = vmatpush1.msra.mxu0 0.0
    %81 = vmatprep.subr.mxu0 %v45
    %82 = vmatpush1.msra.mxu0 %v44
    %83 = vmatprep.subr.mxu0 %v43
    %84 = vmatpush1.msra.mxu0 %v42
    %85 = vmatprep.subr.mxu0 %v41
    %86 = vmatpush1.msra.mxu0 %v40
    %87 = vmatprep.subr.mxu0 %v39
    %88 = vmatpush1.msra.mxu0 %v38
    %89 = vmatprep.subr.mxu0 %v37
    %90 = vmatpush1.msra.mxu0 %v36
    %91 = vmatprep.subr.mxu0 %v35
    %92 = vmatpush1.msra.mxu0 %v34
    %93 = vmatprep.subr.mxu0 %v33
    %94 = vmatpush1.msra.mxu0 %v32
    %95 = vmatprep.subr.mxu0 %v31
    %96 = vmatpush1.msra.mxu0 %v30
    %97 = vmatprep.subr.mxu0 0.0
    %98 = vmatpush2.msra.mxu0 0.0
    %99 = vmatprep.subr.mxu0 0.0
    %100 = vmatpush2.msra.mxu0 0.0
    %101 = vmatprep.subr.mxu0 0.0
    %102 = vmatpush2.msra.mxu0 0.0
    %103 = vmatprep.subr.mxu0 0.0
    %104 = vmatpush2.msra.mxu0 0.0
    %105 = vmatprep.subr.mxu0 0.0
    %106 = vmatpush2.msra.mxu0 0.0
    %107 = vmatprep.subr.mxu0 0.0
    %108 = vmatpush2.msra.mxu0 0.0
    %109 = vmatprep.subr.mxu0 0.0
    %110 = vmatpush2.msra.mxu0 0.0
    %111 = vmatprep.subr.mxu0 0.0
    %112 = vmatpush2.msra.mxu0 0.0
    %113 = vmatprep.subr.mxu0 0.0
    %114 = vmatpush2.msra.mxu0 0.0
    %115 = vmatprep.subr.mxu0 0.0
    %116 = vmatpush2.msra.mxu0 0.0
    %117 = vmatprep.subr.mxu0 0.0
    %118 = vmatpush2.msra.mxu0 0.0
    %119 = vmatprep.subr.mxu0 0.0
    %120 = vmatpush2.msra.mxu0 0.0
    %121 = vmatprep.subr.mxu0 0.0
    %122 = vmatpush2.msra.mxu0 0.0
    %123 = vmatprep.subr.mxu0 0.0
    %124 = vmatpush2.msra.mxu0 0.0
    %125 = vmatprep.subr.mxu0 0.0
    %126 = vmatpush2.msra.mxu0 0.0
    %127 = vmatprep.subr.mxu0 0.0
    %128 = vmatpush2.msra.mxu0 0.0
    %129 = vmatprep.mubr.f32.mxu0 0.0
    %130 = vmatmul.mubr.f32.gmra.mxu0 %v60
    %v131 = vpop.f32.mrf.mxu0
    %v132 = vadd.f32 %v51, %v131
    %v133 = vpop.f32.mrf.mxu0
    %v134 = vadd.f32 %v55, %v133
    %135 = vmatprep.mubr.f32.mxu0 0.0
    %136 = vmatmul.mubr.f32.gmra.mxu0 %v63
    %v137 = vpop.f32.mrf.mxu0
    %v138 = vadd.f32 %v51, %v137
    %v139 = vpop.f32.mrf.mxu0
    %v140 = vadd.f32 %v55, %v139
    %141 = vdwg.mxu0
    %v142 = vmul.f32 %v132, 0.5
    %v143 = vmul.f32 %v134, 0.5
    %v144 = vmul.f32 %v138, 0.5
    %v145 = vmul.f32 %v140, 0.5
    %v146 = vmul.f32 %v132, %v132
    %v147 = vmul.f32 %v134, %v134
    %v148 = vmul.f32 %v138, %v138
    %v149 = vmul.f32 %v140, %v140
    %v150 = vmul.f32 %v146, %v132
    %v151 = vmul.f32 %v147, %v134
    %v152 = vmul.f32 %v148, %v138
    %v153 = vmul.f32 %v149, %v140
    %v154 = vmul.f32 %v150, 0.044715
    %v155 = vmul.f32 %v151, 0.044715
    %v156 = vmul.f32 %v152, 0.044715
    %v157 = vmul.f32 %v153, 0.044715
    %v158 = vadd.f32 %v132, %v154
    %v159 = vadd.f32 %v134, %v155
    %v160 = vadd.f32 %v138, %v156
    %v161 = vadd.f32 %v140, %v157
    %v162 = vmul.f32 %v158, 0.7978846
    %v163 = vmul.f32 %v159, 0.7978846
    %v164 = vmul.f32 %v160, 0.7978846
    %v165 = vmul.f32 %v161, 0.7978846
    %v166 = vtanh.pop %v162
    %v167 = vtanh.pop %v163
    %v168 = vtanh.pop %v164
    %v169 = vtanh.pop %v165
    %v170 = vadd.f32 %v166, 1.0
    %v171 = vadd.f32 %v167, 1.0
    %v172 = vadd.f32 %v168, 1.0
    %v173 = vadd.f32 %v169, 1.0
    %v174 = vmul.f32 %v142, %v170
    %v175 = vmul.f32 %v143, %v171
    %v176 = vmul.f32 %v144, %v172
    %v177 = vmul.f32 %v145, %v173
    %v178 = vld [vmem:[#allocation2] sm:$0xff]
    %v179 = vld [vmem:[#allocation2 + $0x8] sm:$0xff]
    %v180 = vld [vmem:[%s3] sm:$0xff]
    %v181 = vld [vmem:[%s3 + $0x8] sm:$0xff]
    %v182 = vld [vmem:[%s3 + $0x10] sm:$0xff]
    %v183 = vld [vmem:[%s3 + $0x18] sm:$0xff]
    %v184 = vld [vmem:[%s3 + $0x20] sm:$0xff]
    %v185 = vld [vmem:[%s3 + $0x28] sm:$0xff]
    %v186 = vld [vmem:[%s3 + $0x30] sm:$0xff]
    %v187 = vld [vmem:[%s3 + $0x38] sm:$0xff]
    %v188 = vld [vmem:[%s3 + $0x40] sm:$0xff]
    %v189 = vld [vmem:[%s3 + $0x48] sm:$0xff]
    %v190 = vld [vmem:[%s3 + $0x50] sm:$0xff]
    %v191 = vld [vmem:[%s3 + $0x58] sm:$0xff]
    %v192 = vld [vmem:[%s3 + $0x60] sm:$0xff]
    %v193 = vld [vmem:[%s3 + $0x68] sm:$0xff]
    %v194 = vld [vmem:[%s3 + $0x70] sm:$0xff]
    %v195 = vld [vmem:[%s3 + $0x78] sm:$0xff]
    %v196 = vld [vmem:[%s3 + $0x80] sm:$0xff]
    %v197 = vld [vmem:[%s3 + $0x88] sm:$0xff]
    %v198 = vld [vmem:[%s3 + $0x90] sm:$0xff]
    %v199 = vld [vmem:[%s3 + $0x98] sm:$0xff]
    %v200 = vld [vmem:[%s3 + $0xa0] sm:$0xff]
    %v201 = vld [vmem:[%s3 + $0xa8] sm:$0xff]
    %v202 = vld [vmem:[%s3 + $0xb0] sm:$0xff]
    %v203 = vld [vmem:[%s3 + $0xb8] sm:$0xff]
    %v204 = vld [vmem:[%s3 + $0xc0] sm:$0xff]
    %v205 = vld [vmem:[%s3 + $0xc8] sm:$0xff]
    %v206 = vld [vmem:[%s3 + $0xd0] sm:$0xff]
    %v207 = vld [vmem:[%s3 + $0xd8] sm:$0xff]
    %v208 = vld [vmem:[%s3 + $0xe0] sm:$0xff]
    %v209 = vld [vmem:[%s3 + $0xe8] sm:$0xff]
    %v210 = vld [vmem:[%s3 + $0xf0] sm:$0xff]
    %v211 = vld [vmem:[%s3 + $0xf8] sm:$0xff]
    %212 = vmatprep.subr.mxu0 0.0
    %213 = vmatpush1.msra.mxu0 %v195
    %214 = vmatprep.subr.mxu0 0.0
    %215 = vmatpush1.msra.mxu0 %v194
    %216 = vmatprep.subr.mxu0 0.0
    %217 = vmatpush1.msra.mxu0 %v193
    %218 = vmatprep.subr.mxu0 0.0
    %219 = vmatpush1.msra.mxu0 %v192
    %220 = vmatprep.subr.mxu0 0.0
    %221 = vmatpush1.msra.mxu0 %v191
    %222 = vmatprep.subr.mxu0 0.0
    %223 = vmatpush1.msra.mxu0 %v190
    %224 = vmatprep.subr.mxu0 0.0
    %225 = vmatpush1.msra.mxu0 %v189
    %226 = vmatprep.subr.mxu0 0.0
    %227 = vmatpush1.msra.mxu0 %v188
    %228 = vmatprep.subr.mxu0 0.0
    %229 = vmatpush1.msra.mxu0 %v187
    %230 = vmatprep.subr.mxu0 0.0
    %231 = vmatpush1.msra.mxu0 %v186
    %232 = vmatprep.subr.mxu0 0.0
    %233 = vmatpush1.msra.mxu0 %v185
    %234 = vmatprep.subr.mxu0 0.0
    %235 = vmatpush1.msra.mxu0 %v184
    %236 = vmatprep.subr.mxu0 0.0
    %237 = vmatpush1.msra.mxu0 %v183
    %238 = vmatprep.subr.mxu0 0.0
    %239 = vmatpush1.msra.mxu0 %v182
    %240 = vmatprep.subr.mxu0 0.0
    %241 = vmatpush1.msra.mxu0 %v181
    %242 = vmatprep.subr.mxu0 0.0
    %243 = vmatpush1.msra.mxu0 %v180
    %244 = vmatprep.subr.mxu0 0.0
    %245 = vmatpush2.msra.mxu0 %v211
    %246 = vmatprep.subr.mxu0 0.0
    %247 = vmatpush2.msra.mxu0 %v210
    %248 = vmatprep.subr.mxu0 0.0
    %249 = vmatpush2.msra.mxu0 %v209
    %250 = vmatprep.subr.mxu0 0.0
    %251 = vmatpush2.msra.mxu0 %v208
    %252 = vmatprep.subr.mxu0 0.0
    %253 = vmatpush2.msra.mxu0 %v207
    %254 = vmatprep.subr.mxu0 0.0
    %255 = vmatpush2.msra.mxu0 %v206
    %256 = vmatprep.subr.mxu0 0.0
    %257 = vmatpush2.msra.mxu0 %v205
    %258 = vmatprep.subr.mxu0 0.0
    %259 = vmatpush2.msra.mxu0 %v204
    %260 = vmatprep.subr.mxu0 0.0
    %261 = vmatpush2.msra.mxu0 %v203
    %262 = vmatprep.subr.mxu0 0.0
    %263 = vmatpush2.msra.mxu0 %v202
    %264 = vmatprep.subr.mxu0 0.0
    %265 = vmatpush2.msra.mxu0 %v201
    %266 = vmatprep.subr.mxu0 0.0
    %267 = vmatpush2.msra.mxu0 %v200
    %268 = vmatprep.subr.mxu0 0.0
    %269 = vmatpush2.msra.mxu0 %v199
    %270 = vmatprep.subr.mxu0 0.0
    %271 = vmatpush2.msra.mxu0 %v198
    %272 = vmatprep.subr.mxu0 0.0
    %273 = vmatpush2.msra.mxu0 %v197
    %274 = vmatprep.subr.mxu0 0.0
    %275 = vmatpush2.msra.mxu0 %v196
    %276 = vmatprep.mubr.f32.mxu0 %v175
    %277 = vmatmul.mubr.f32.gmra.mxu0 %v174
    %v278 = vpop.f32.mrf.mxu0
    %v279 = vadd.f32 0.0, %v278
    %v280 = vpop.f32.mrf.mxu0
    %281 = vmatprep.mubr.f32.mxu0 %v177
    %282 = vmatmul.mubr.f32.gmra.mxu0 %v176
    %v283 = vpop.f32.mrf.mxu0
    %v284 = vadd.f32 0.0, %v283
    %v285 = vpop.f32.mrf.mxu0
    %286 = vdwg.mxu0
    %v287 = vadd.f32 %v178, %v279
    %v288 = vadd.f32 %v179, %v284
    %289 = vst.msk [vmem:[#allocation2] sm:$0xff] %vm58, %v287
    %290 = vst.msk [vmem:[#allocation2 + $0x8] sm:$0xff] %vm58, %v288
    // Predicated region
    $region26: #{tpu_custom_call.1} parent=1 // pred_check
      %p291 = pneg %p21
    $region27: #{tpu_custom_call.1} parent=1 // pred_check_branch
      %293 = sbr.rel (%p291) target = $region29
    $region28: #{tpu_custom_call.1} parent=1 // pred_region
      %v294 = vld [vmem:[#allocation2] sm:$0xff]
      %v295 = vld [vmem:[#allocation2 + $0x8] sm:$0xff]
      %v296 = vld [vmem:[%s4] sm:$0x1]
      %v298 = vlaneseq
      %v299 = vshrl.u32 %v298, 7
      %v300 = vsub.s32 0, %v299
      %v301 = vrot.slane %v296, %v300
      %v303 = vadd.f32 %v294, %v301
      %v304 = vadd.f32 %v295, %v301
      %305 = vst.msk [vmem:[#allocation3] sm:$0xff] %vm58, %v303
      %306 = vst.msk [vmem:[#allocation3 + $0x8] sm:$0xff] %vm58, %v304
    $region29: #{tpu_custom_call.1} parent=1 // pred_fallthru
      _
    // Predicated region
    $region30: #{tpu_custom_call.1} parent=1 // pred_check
      _
    $region31: #{tpu_custom_call.1} parent=1 // pred_check_branch
      %308 = sbr.rel (0) target = $region33
    $region32: #{tpu_custom_call.1} parent=1 // pred_region
      %s310 = ssub.s32 256, 256
      %311 = vsyncadd [#allocation4], %s310
      %s312 = sshll.u32 [#allocation3], 4
      %s313 = int_to_ptr.vmem [resolvable:$true] %s312
      %318 = dma.vmem_to_hbm [thread:$0]  %s313, 256, %s5, [#allocation4], 128, 128, 8
    $region33: #{tpu_custom_call.1} parent=1 // pred_fallthru
      _
    // Predicated region
    $region34: #{tpu_custom_call.1} parent=1 // pred_check
      _
    $region35: #{tpu_custom_call.1} parent=1 // pred_check_branch
      %320 = sbr.rel (0) target = $region37
    $region36: #{tpu_custom_call.1} parent=1 // pred_region
      %321 = dma.done [#allocation4], 256
    $region37: #{tpu_custom_call.1} parent=1 // pred_fallthru
      _
    %322 = vsyncpa [#allocation4], 1

// kernel: tpu_custom_call.1
$region0: #{tpu_custom_call.1}
  #allocation0 [shape = 'u32[]', space=smem, size = 0x4, offset = 0x4, fixed_abs, tag = 'smem constant byte address 0x4 - core index']
  #allocation1 [shape = 'u32[144,128]{1,0:T(1,128)}', space=vmem, size = 0x12000, scoped, tag = 'internal scratch']
  #allocation2 [shape = 'f32[16,64]{1,0:T(8,128)}', space=vmem, size = 0x2000, scoped, tag = 'scratch operand']
  %s0 = inlined_call_operand.vmem [shape: f32[16,64], index: 0, kind: input, shape index: {}]
  %s1 = inlined_call_operand.vmem [shape: f32[64,256], index: 1, kind: input, shape index: {}]
  %s2 = inlined_call_operand.vmem [shape: f32[1,256], index: 2, kind: input, shape index: {}]
  %s3 = inlined_call_operand.vmem [shape: f32[256,64], index: 3, kind: input, shape index: {}]
  %s4 = inlined_call_operand.vmem [shape: f32[1,64], index: 4, kind: input, shape index: {}]
  %s5 = inlined_call_operand.hbm [shape: f32[16,64], index: 5, kind: output, shape index: {}]
  %s6 = sld [smem:[#allocation0]]
  $region38: #{tpu_custom_call.1} parent=0
    _
  %s8 = ssub.s32 1, %s6
  %s9 = scalar_select 0, %s8, %s6
  $region1: #{tpu_custom_call.1} parent=0
    #allocation3 [shape = 'u8[8192]{0}', space=vmem, size = 0x2000, scoped, tag = 'output window, operand 0, single buffered']
    #allocation4 [shape = 's32[1]{0}', space=sflag, size = 0x4, scoped, tag = 'scoped memory for tpu_custom_call.1']
    %10 = vsyncpa [#allocation4], 0
    // Predicated region
    $region2: #{tpu_custom_call.1} parent=1 // pred_check
      _
    $region3: #{tpu_custom_call.1} parent=1 // pred_check_branch
      %12 = sbr.rel (0) target = $region5
    $region4: #{tpu_custom_call.1} parent=1 // pred_region
      _
    $region5: #{tpu_custom_call.1} parent=1 // pred_fallthru
      _
    // Predicated region
    $region6: #{tpu_custom_call.1} parent=1 // pred_check
      _
    $region7: #{tpu_custom_call.1} parent=1 // pred_check_branch
      %14 = sbr.rel (0) target = $region9
    $region8: #{tpu_custom_call.1} parent=1 // pred_region
      _
    $region9: #{tpu_custom_call.1} parent=1 // pred_fallthru
      _
    // Predicated region
    $region10: #{tpu_custom_call.1} parent=1 // pred_check
      _
    $region11: #{tpu_custom_call.1} parent=1 // pred_check_branch
      %16 = sbr.rel (0) target = $region13
    $region12: #{tpu_custom_call.1} parent=1 // pred_region
      _
    $region13: #{tpu_custom_call.1} parent=1 // pred_fallthru
      _
    // Predicated region
    $region14: #{tpu_custom_call.1} parent=1 // pred_check
      _
    $region15: #{tpu_custom_call.1} parent=1 // pred_check_branch
      %18 = sbr.rel (0) target = $region17
    $region16: #{tpu_custom_call.1} parent=1 // pred_region
      _
    $region17: #{tpu_custom_call.1} parent=1 // pred_fallthru
      _
    // Predicated region
    $region18: #{tpu_custom_call.1} parent=1 // pred_check
      _
    $region19: #{tpu_custom_call.1} parent=1 // pred_check_branch
      %20 = sbr.rel (0) target = $region21
    $region20: #{tpu_custom_call.1} parent=1 // pred_region
      _
    $region21: #{tpu_custom_call.1} parent=1 // pred_fallthru
      _
    %p21 = scmp.eq.s32.totalorder 0, 0
    // Predicated region
    $region22: #{tpu_custom_call.1} parent=1 // pred_check
      %p22 = pneg %p21
    $region23: #{tpu_custom_call.1} parent=1 // pred_check_branch
      %24 = sbr.rel (%p22) target = $region25
    $region24: #{tpu_custom_call.1} parent=1 // pred_region
      %vm25 = vcmask 523264
      %26 = vst.msk [vmem:[#allocation2] sm:$0xff] %vm25, 0.0
      %27 = vst.msk [vmem:[#allocation2 + $0x8] sm:$0xff] %vm25, 0.0
    $region25: #{tpu_custom_call.1} parent=1 // pred_fallthru
      _
    %v28 = vld [vmem:[%s0] sm:$0xff]
    %v29 = vld [vmem:[%s0 + $0x8] sm:$0xff]
    %v30 = vld [vmem:[%s1] sm:$0xff]
    %v31 = vld [vmem:[%s1 + $0x8] sm:$0xff]
    %v32 = vld [vmem:[%s1 + $0x10] sm:$0xff]
    %v33 = vld [vmem:[%s1 + $0x18] sm:$0xff]
    %v34 = vld [vmem:[%s1 + $0x20] sm:$0xff]
    %v35 = vld [vmem:[%s1 + $0x28] sm:$0xff]
    %v36 = vld [vmem:[%s1 + $0x30] sm:$0xff]
    %v37 = vld [vmem:[%s1 + $0x38] sm:$0xff]
    %v38 = vld [vmem:[%s1 + $0x40] sm:$0xff]
    %v39 = vld [vmem:[%s1 + $0x48] sm:$0xff]
    %v40 = vld [vmem:[%s1 + $0x50] sm:$0xff]
    %v41 = vld [vmem:[%s1 + $0x58] sm:$0xff]
    %v42 = vld [vmem:[%s1 + $0x60] sm:$0xff]
    %v43 = vld [vmem:[%s1 + $0x68] sm:$0xff]
    %v44 = vld [vmem:[%s1 + $0x70] sm:$0xff]
    %v45 = vld [vmem:[%s1 + $0x78] sm:$0xff]
    %v46 = vld [vmem:[%s2] sm:$0x3]
    %v48 = vlaneseq
    %v49 = vshrl.u32 %v48, 7
    %v50 = vsub.s32 0, %v49
    %v51 = vrot.slane %v46, %v50
    %v52 = vlaneseq
    %v53 = vshrl.u32 %v52, 7
    %v54 = vsub.s32 1, %v53
    %v55 = vrot.slane %v46, %v54
    %vm58 = vcmask 523264
    %v60 = vsel %vm58, %v28, 0
    %v63 = vsel %vm58, %v29, 0
    %65 = vmatprep.subr.mxu0 0.0
    %66 = vmatpush1.msra.mxu0 0.0
    %67 = vmatprep.subr.mxu0 0.0
    %68 = vmatpush1.msra.mxu0 0.0
    %69 = vmatprep.subr.mxu0 0.0
    %70 = vmatpush1.msra.mxu0 0.0
    %71 = vmatprep.subr.mxu0 0.0
    %72 = vmatpush1.msra.mxu0 0.0
    %73 = vmatprep.subr.mxu0 0.0
    %74 = vmatpush1.msra.mxu0 0.0
    %75 = vmatprep.subr.mxu0 0.0
    %76 = vmatpush1.msra.mxu0 0.0
    %77 = vmatprep.subr.mxu0 0.0
    %78 = vmatpush1.msra.mxu0 0.0
    %79 = vmatprep.subr.mxu0 0.0
    %80 = vmatpush1.msra.mxu0 0.0
    %81 = vmatprep.subr.mxu0 %v45
    %82 = vmatpush1.msra.mxu0 %v44
    %83 = vmatprep.subr.mxu0 %v43
    %84 = vmatpush1.msra.mxu0 %v42
    %85 = vmatprep.subr.mxu0 %v41
    %86 = vmatpush1.msra.mxu0 %v40
    %87 = vmatprep.subr.mxu0 %v39
    %88 = vmatpush1.msra.mxu0 %v38
    %89 = vmatprep.subr.mxu0 %v37
    %90 = vmatpush1.msra.mxu0 %v36
    %91 = vmatprep.subr.mxu0 %v35
    %92 = vmatpush1.msra.mxu0 %v34
    %93 = vmatprep.subr.mxu0 %v33
    %94 = vmatpush1.msra.mxu0 %v32
    %95 = vmatprep.subr.mxu0 %v31
    %96 = vmatpush1.msra.mxu0 %v30
    %97 = vmatprep.subr.mxu0 0.0
    %98 = vmatpush2.msra.mxu0 0.0
    %99 = vmatprep.subr.mxu0 0.0
    %100 = vmatpush2.msra.mxu0 0.0
    %101 = vmatprep.subr.mxu0 0.0
    %102 = vmatpush2.msra.mxu0 0.0
    %103 = vmatprep.subr.mxu0 0.0
    %104 = vmatpush2.msra.mxu0 0.0
    %105 = vmatprep.subr.mxu0 0.0
    %106 = vmatpush2.msra.mxu0 0.0
    %107 = vmatprep.subr.mxu0 0.0
    %108 = vmatpush2.msra.mxu0 0.0
    %109 = vmatprep.subr.mxu0 0.0
    %110 = vmatpush2.msra.mxu0 0.0
    %111 = vmatprep.subr.mxu0 0.0
    %112 = vmatpush2.msra.mxu0 0.0
    %113 = vmatprep.subr.mxu0 0.0
    %114 = vmatpush2.msra.mxu0 0.0
    %115 = vmatprep.subr.mxu0 0.0
    %116 = vmatpush2.msra.mxu0 0.0
    %117 = vmatprep.subr.mxu0 0.0
    %118 = vmatpush2.msra.mxu0 0.0
    %119 = vmatprep.subr.mxu0 0.0
    %120 = vmatpush2.msra.mxu0 0.0
    %121 = vmatprep.subr.mxu0 0.0
    %122 = vmatpush2.msra.mxu0 0.0
    %123 = vmatprep.subr.mxu0 0.0
    %124 = vmatpush2.msra.mxu0 0.0
    %125 = vmatprep.subr.mxu0 0.0
    %126 = vmatpush2.msra.mxu0 0.0
    %127 = vmatprep.subr.mxu0 0.0
    %128 = vmatpush2.msra.mxu0 0.0
    %129 = vmatprep.mubr.f32.mxu0 0.0
    %130 = vmatmul.mubr.f32.gmra.mxu0 %v60
    %v131 = vpop.f32.mrf.mxu0
    %v132 = vadd.f32 %v51, %v131
    %v133 = vpop.f32.mrf.mxu0
    %v134 = vadd.f32 %v55, %v133
    %135 = vmatprep.mubr.f32.mxu0 0.0
    %136 = vmatmul.mubr.f32.gmra.mxu0 %v63
    %v137 = vpop.f32.mrf.mxu0
    %v138 = vadd.f32 %v51, %v137
    %v139 = vpop.f32.mrf.mxu0
    %v140 = vadd.f32 %v55, %v139
    %141 = vdwg.mxu0
    %v142 = vmul.f32 %v132, 0.5
    %v143 = vmul.f32 %v134, 0.5
    %v144 = vmul.f32 %v138, 0.5
    %v145 = vmul.f32 %v140, 0.5
    %v146 = vmul.f32 %v132, %v132
    %v147 = vmul.f32 %v134, %v134
    %v148 = vmul.f32 %v138, %v138
    %v149 = vmul.f32 %v140, %v140
    %v150 = vmul.f32 %v146, %v132
    %v151 = vmul.f32 %v147, %v134
    %v152 = vmul.f32 %v148, %v138
    %v153 = vmul.f32 %v149, %v140
    %v154 = vmul.f32 %v150, 0.044715
    %v155 = vmul.f32 %v151, 0.044715
    %v156 = vmul.f32 %v152, 0.044715
    %v157 = vmul.f32 %v153, 0.044715
    %v158 = vadd.f32 %v132, %v154
    %v159 = vadd.f32 %v134, %v155
    %v160 = vadd.f32 %v138, %v156
    %v161 = vadd.f32 %v140, %v157
    %v162 = vmul.f32 %v158, 0.7978846
    %v163 = vmul.f32 %v159, 0.7978846
    %v164 = vmul.f32 %v160, 0.7978846
    %v165 = vmul.f32 %v161, 0.7978846
    %v166 = vtanh.pop %v162
    %v167 = vtanh.pop %v163
    %v168 = vtanh.pop %v164
    %v169 = vtanh.pop %v165
    %v170 = vadd.f32 %v166, 1.0
    %v171 = vadd.f32 %v167, 1.0
    %v172 = vadd.f32 %v168, 1.0
    %v173 = vadd.f32 %v169, 1.0
    %v174 = vmul.f32 %v142, %v170
    %v175 = vmul.f32 %v143, %v171
    %v176 = vmul.f32 %v144, %v172
    %v177 = vmul.f32 %v145, %v173
    %v178 = vld [vmem:[#allocation2] sm:$0xff]
    %v179 = vld [vmem:[#allocation2 + $0x8] sm:$0xff]
    %v180 = vld [vmem:[%s3] sm:$0xff]
    %v181 = vld [vmem:[%s3 + $0x8] sm:$0xff]
    %v182 = vld [vmem:[%s3 + $0x10] sm:$0xff]
    %v183 = vld [vmem:[%s3 + $0x18] sm:$0xff]
    %v184 = vld [vmem:[%s3 + $0x20] sm:$0xff]
    %v185 = vld [vmem:[%s3 + $0x28] sm:$0xff]
    %v186 = vld [vmem:[%s3 + $0x30] sm:$0xff]
    %v187 = vld [vmem:[%s3 + $0x38] sm:$0xff]
    %v188 = vld [vmem:[%s3 + $0x40] sm:$0xff]
    %v189 = vld [vmem:[%s3 + $0x48] sm:$0xff]
    %v190 = vld [vmem:[%s3 + $0x50] sm:$0xff]
    %v191 = vld [vmem:[%s3 + $0x58] sm:$0xff]
    %v192 = vld [vmem:[%s3 + $0x60] sm:$0xff]
    %v193 = vld [vmem:[%s3 + $0x68] sm:$0xff]
    %v194 = vld [vmem:[%s3 + $0x70] sm:$0xff]
    %v195 = vld [vmem:[%s3 + $0x78] sm:$0xff]
    %v196 = vld [vmem:[%s3 + $0x80] sm:$0xff]
    %v197 = vld [vmem:[%s3 + $0x88] sm:$0xff]
    %v198 = vld [vmem:[%s3 + $0x90] sm:$0xff]
    %v199 = vld [vmem:[%s3 + $0x98] sm:$0xff]
    %v200 = vld [vmem:[%s3 + $0xa0] sm:$0xff]
    %v201 = vld [vmem:[%s3 + $0xa8] sm:$0xff]
    %v202 = vld [vmem:[%s3 + $0xb0] sm:$0xff]
    %v203 = vld [vmem:[%s3 + $0xb8] sm:$0xff]
    %v204 = vld [vmem:[%s3 + $0xc0] sm:$0xff]
    %v205 = vld [vmem:[%s3 + $0xc8] sm:$0xff]
    %v206 = vld [vmem:[%s3 + $0xd0] sm:$0xff]
    %v207 = vld [vmem:[%s3 + $0xd8] sm:$0xff]
    %v208 = vld [vmem:[%s3 + $0xe0] sm:$0xff]
    %v209 = vld [vmem:[%s3 + $0xe8] sm:$0xff]
    %v210 = vld [vmem:[%s3 + $0xf0] sm:$0xff]
    %v211 = vld [vmem:[%s3 + $0xf8] sm:$0xff]
    %212 = vmatprep.subr.mxu0 0.0
    %213 = vmatpush1.msra.mxu0 %v195
    %214 = vmatprep.subr.mxu0 0.0
    %215 = vmatpush1.msra.mxu0 %v194
    %216 = vmatprep.subr.mxu0 0.0
    %217 = vmatpush1.msra.mxu0 %v193
    %218 = vmatprep.subr.mxu0 0.0
    %219 = vmatpush1.msra.mxu0 %v192
    %220 = vmatprep.subr.mxu0 0.0
    %221 = vmatpush1.msra.mxu0 %v191
    %222 = vmatprep.subr.mxu0 0.0
    %223 = vmatpush1.msra.mxu0 %v190
    %224 = vmatprep.subr.mxu0 0.0
    %225 = vmatpush1.msra.mxu0 %v189
    %226 = vmatprep.subr.mxu0 0.0
    %227 = vmatpush1.msra.mxu0 %v188
    %228 = vmatprep.subr.mxu0 0.0
    %229 = vmatpush1.msra.mxu0 %v187
    %230 = vmatprep.subr.mxu0 0.0
    %231 = vmatpush1.msra.mxu0 %v186
    %232 = vmatprep.subr.mxu0 0.0
    %233 = vmatpush1.msra.mxu0 %v185
    %234 = vmatprep.subr.mxu0 0.0
    %235 = vmatpush1.msra.mxu0 %v184
    %236 = vmatprep.subr.mxu0 0.0
    %237 = vmatpush1.msra.mxu0 %v183
    %238 = vmatprep.subr.mxu0 0.0
    %239 = vmatpush1.msra.mxu0 %v182
    %240 = vmatprep.subr.mxu0 0.0
    %241 = vmatpush1.msra.mxu0 %v181
    %242 = vmatprep.subr.mxu0 0.0
    %243 = vmatpush1.msra.mxu0 %v180
    %244 = vmatprep.subr.mxu0 0.0
    %245 = vmatpush2.msra.mxu0 %v211
    %246 = vmatprep.subr.mxu0 0.0
    %247 = vmatpush2.msra.mxu0 %v210
    %248 = vmatprep.subr.mxu0 0.0
    %249 = vmatpush2.msra.mxu0 %v209
    %250 = vmatprep.subr.mxu0 0.0
    %251 = vmatpush2.msra.mxu0 %v208
    %252 = vmatprep.subr.mxu0 0.0
    %253 = vmatpush2.msra.mxu0 %v207
    %254 = vmatprep.subr.mxu0 0.0
    %255 = vmatpush2.msra.mxu0 %v206
    %256 = vmatprep.subr.mxu0 0.0
    %257 = vmatpush2.msra.mxu0 %v205
    %258 = vmatprep.subr.mxu0 0.0
    %259 = vmatpush2.msra.mxu0 %v204
    %260 = vmatprep.subr.mxu0 0.0
    %261 = vmatpush2.msra.mxu0 %v203
    %262 = vmatprep.subr.mxu0 0.0
    %263 = vmatpush2.msra.mxu0 %v202
    %264 = vmatprep.subr.mxu0 0.0
    %265 = vmatpush2.msra.mxu0 %v201
    %266 = vmatprep.subr.mxu0 0.0
    %267 = vmatpush2.msra.mxu0 %v200
    %268 = vmatprep.subr.mxu0 0.0
    %269 = vmatpush2.msra.mxu0 %v199
    %270 = vmatprep.subr.mxu0 0.0
    %271 = vmatpush2.msra.mxu0 %v198
    %272 = vmatprep.subr.mxu0 0.0
    %273 = vmatpush2.msra.mxu0 %v197
    %274 = vmatprep.subr.mxu0 0.0
    %275 = vmatpush2.msra.mxu0 %v196
    %276 = vmatprep.mubr.f32.mxu0 %v175
    %277 = vmatmul.mubr.f32.gmra.mxu0 %v174
    %v278 = vpop.f32.mrf.mxu0
    %v279 = vadd.f32 0.0, %v278
    %v280 = vpop.f32.mrf.mxu0
    %281 = vmatprep.mubr.f32.mxu0 %v177
    %282 = vmatmul.mubr.f32.gmra.mxu0 %v176
    %v283 = vpop.f32.mrf.mxu0
    %v284 = vadd.f32 0.0, %v283
    %v285 = vpop.f32.mrf.mxu0
    %286 = vdwg.mxu0
    %v287 = vadd.f32 %v178, %v279
    %v288 = vadd.f32 %v179, %v284
    %289 = vst.msk [vmem:[#allocation2] sm:$0xff] %vm58, %v287
    %290 = vst.msk [vmem:[#allocation2 + $0x8] sm:$0xff] %vm58, %v288
    // Predicated region
    $region26: #{tpu_custom_call.1} parent=1 // pred_check
      %p291 = pneg %p21
    $region27: #{tpu_custom_call.1} parent=1 // pred_check_branch
      %293 = sbr.rel (%p291) target = $region29
    $region28: #{tpu_custom_call.1} parent=1 // pred_region
      %v294 = vld [vmem:[#allocation2] sm:$0xff]
      %v295 = vld [vmem:[#allocation2 + $0x8] sm:$0xff]
      %v296 = vld [vmem:[%s4] sm:$0x1]
      %v298 = vlaneseq
      %v299 = vshrl.u32 %v298, 7
      %v300 = vsub.s32 0, %v299
      %v301 = vrot.slane %v296, %v300
      %v303 = vadd.f32 %v294, %v301
      %v304 = vadd.f32 %v295, %v301
      %305 = vst.msk [vmem:[#allocation3] sm:$0xff] %vm58, %v303
      %306 = vst.msk [vmem:[#allocation3 + $0x8] sm:$0xff] %vm58, %v304
    $region29: #{tpu_custom_call.1} parent=1 // pred_fallthru
      _
    // Predicated region
    $region30: #{tpu_custom_call.1} parent=1 // pred_check
      _
    $region31: #{tpu_custom_call.1} parent=1 // pred_check_branch
      %308 = sbr.rel (0) target = $region33
    $region32: #{tpu_custom_call.1} parent=1 // pred_region
      %s310 = ssub.s32 256, 256
      %311 = vsyncadd [#allocation4], %s310
      %s312 = sshll.u32 [#allocation3], 4
      %s313 = int_to_ptr.vmem [resolvable:$true] %s312
      %318 = dma.vmem_to_hbm [thread:$0]  %s313, 256, %s5, [#allocation4], 128, 128, 8
    $region33: #{tpu_custom_call.1} parent=1 // pred_fallthru
      _
    // Predicated region
    $region34: #{tpu_custom_call.1} parent=1 // pred_check
      _
    $region35: #{tpu_custom_call.1} parent=1 // pred_check_branch
      %320 = sbr.rel (0) target = $region37
    $region36: #{tpu_custom_call.1} parent=1 // pred_region
      %321 = dma.done [#allocation4], 256
    $region37: #{tpu_custom_call.1} parent=1 // pred_fallthru
      _
    %322 = vsyncpa [#allocation4], 1

</llo_original>
